<compile_context>
chip_gen: v7x
topology: tpu7x:2x2x1
jax: 0.10.0
libtpu: 0.0.40
codegen_flags: <defaults>
</compile_context>

<pallas_src>
import functools

import jax
import jax.numpy as jnp
from jax.experimental import pallas as pl
from jax.experimental.pallas import tpu as pltpu

_WIDTH = 128  # lane width; all feature dims are zero-padded to this


def _round_up(n, m):
    return ((n + m - 1) // m) * m


def _fcn_fused_kernel(x_ref, w_ref, b_ref, out_ref, *, num_layers, width):
    """x_ref: (bt, width) f32; w_ref: (num_layers*width, width) bf16;
    b_ref: (num_layers, width) f32; out_ref: (bt, width) f32.

    Chains matmul (MXU, bf16 operands / f32 accumulate) + bias add (VPU, f32)
    + tanh (EUP, f32), keeping activations on-chip.  tanh is skipped on the
    final layer (matches the PyTorch module).  All slab slices are static.
    """
    h = x_ref[...]  # (bt, width) f32
    for i in range(num_layers):
        w = w_ref[pl.ds(i * width, width), :]        # (width, width) bf16
        b = b_ref[pl.ds(i, 1), :]                    # (1, width) f32
        h = jnp.dot(h.astype(jnp.bfloat16), w,
                    preferred_element_type=jnp.float32) + b
        if i < num_layers - 1:
            h = jnp.tanh(h)
    out_ref[...] = h.astype(out_ref.dtype)


def fcn_forward_fused(x, w_slab, b_slab, out_features, *, batch_tile=None):
    """Fused FCN forward.

    x: (B, in_f) f32.
    w_slab: (num_layers*width, width) bf16 packed weights (pack_params).
    b_slab: (num_layers, width) f32 packed biases (pack_params).
    out_features: true output width (padded columns are sliced off).
    batch_tile: rows per grid step (multiple of 8); grid axis is 'parallel'
      so two TensorCores (v7x) split the batch.  Default: whole batch.
    """
    width = w_slab.shape[1]
    num_layers = b_slab.shape[0]
    B, in_f = x.shape

    if batch_tile is None:
        batch_tile = max(8, _round_up(B, 8))
    batch_tile = max(8, _round_up(batch_tile, 8))
    b_pad = _round_up(B, batch_tile)
    num_tiles = b_pad // batch_tile

    # Zero-pad batch rows and feature columns to (b_pad, width); zeros stay
    # zero through matmul/bias/tanh so real outputs are unaffected.
    x_pad = jnp.zeros((b_pad, width), dtype=jnp.float32)
    x_pad = x_pad.at[:B, :in_f].set(x.astype(jnp.float32))

    kernel = functools.partial(_fcn_fused_kernel,
                               num_layers=num_layers, width=width)

    flops = 2 * b_pad * width * width * num_layers
    transcendentals = b_pad * width * (num_layers - 1)
    bytes_accessed = (x_pad.size * 4 + w_slab.size * 2 + b_slab.size * 4
                      + b_pad * width * 4)

    out_pad = pl.pallas_call(
        kernel,
        out_shape=jax.ShapeDtypeStruct((b_pad, width), jnp.float32),
        grid=(num_tiles,),
        in_specs=[
            pl.BlockSpec((batch_tile, width), lambda i: (i, 0)),  # x tile
            pl.BlockSpec(w_slab.shape, lambda i: (0, 0)),         # resident
            pl.BlockSpec(b_slab.shape, lambda i: (0, 0)),         # resident
        ],
        out_specs=pl.BlockSpec((batch_tile, width), lambda i: (i, 0)),
        compiler_params=pltpu.CompilerParams(
            dimension_semantics=("parallel",)),
        cost_estimate=pl.CostEstimate(
            flops=flops,
            transcendentals=transcendentals,
            bytes_accessed=bytes_accessed),
    )(x_pad, w_slab, b_slab)

    return out_pad[:B, :out_features]


def init_fcn_params(key, layers):
    """Deterministic init matching torch.nn.Linear shapes: W (out, in), b (out,)."""
    params = []
    for i in range(len(layers) - 1):
        key, kw, kb = jax.random.split(key, 3)
        fan_in = layers[i]
        bound = 1.0 / (fan_in ** 0.5)
        W = jax.random.uniform(kw, (layers[i + 1], layers[i]),
                               minval=-bound, maxval=bound, dtype=jnp.float32)
        b = jax.random.uniform(kb, (layers[i + 1],),
                               minval=-bound, maxval=bound, dtype=jnp.float32)
        params.append((W, b))
    return params


def pack_params(params, width=_WIDTH):
    """One-time packing into two lane-dense slabs.

    Weights: transposed to (in_f, out_f), zero-padded into a
    (num_layers*width, width) slab, cast to bf16 (MXU operand dtype).
    Biases: zero-padded rows of a (num_layers, width) f32 slab.
    """
    num_layers = len(params)
    w_slab = jnp.zeros((num_layers * width, width), dtype=jnp.float32)
    b_slab = jnp.zeros((num_layers, width), dtype=jnp.float32)
    for i, (W, b) in enumerate(params):
        out_f, in_f = W.shape
        assert in_f <= width and out_f <= width, "layer dims must fit lane width"
        w_slab = w_slab.at[i * width:i * width + in_f, :out_f].set(W.T)
        b_slab = b_slab.at[i, :out_f].set(b)
    return w_slab.astype(jnp.bfloat16), b_slab


def fcn_reference_f32(params, x):
    """Pure-JAX f32 reference with torch semantics."""
    n = len(params)
    for i, (W, b) in enumerate(params):
        x = x @ W.T + b
        if i < n - 1:
            x = jnp.tanh(x)
    return x


def fcn_reference_bf16(params, x):
    """Pure-JAX reference using the same bf16-operand / f32-accumulate recipe."""
    n = len(params)
    for i, (W, b) in enumerate(params):
        x = jnp.dot(x.astype(jnp.bfloat16), W.T.astype(jnp.bfloat16),
                    preferred_element_type=jnp.float32) + b
        if i < n - 1:
            x = jnp.tanh(x)
    return x


# TODO(synk): batch_norm=True path (torch.nn.BatchNorm1d) not implemented; the
# module's default (batch_norm=False), which this matches, has no batch norm.


if __name__ == "__main__":
    # layers = [in, hidden, hidden, out]; activation = tanh (skipped on last layer)
    layers = [32, 64, 64, 16]
    batch = 128          # fills the MXU M dim (perf review: amortize fixed cost)
    batch_tile = 64      # grid=(2,), 'parallel' -> v7x's 2 TCs split the batch

    key = jax.random.PRNGKey(0)
    key, kx = jax.random.split(key)
    x = jax.random.normal(kx, (batch, layers[0]), dtype=jnp.float32)

    params = init_fcn_params(key, layers)        # torch-layout (for reference)
    w_slab, b_slab = pack_params(params)         # kernel layout, packed once

    out = fcn_forward_fused(x, w_slab, b_slab, layers[-1],
                            batch_tile=batch_tile)
    out = jax.block_until_ready(out)
    assert out.shape == (batch, layers[-1])

    # Tight check vs. a reference that uses the same bf16-operand recipe.
    ref_matched = fcn_reference_bf16(params, x)
    assert jnp.allclose(out, ref_matched, atol=1e-3, rtol=1e-3), \
        "mismatch vs bf16-matched reference"

    # Loose check vs. the pure-f32 torch-semantics reference (bf16 weights).
    ref_f32 = fcn_reference_f32(params, x)
    assert jnp.allclose(out, ref_f32, atol=3e-2, rtol=3e-2), \
        "mismatch vs f32 reference"

    print("KERNEL_OK")
</pallas_src>

<mosaic_0001>
module attributes {stable_mosaic.version = 11 : i64} {
  func.func @_fcn_fused_kernel(%arg0: i32, %arg1: memref<64x128xf32, #tpu.memory_space<vmem>>, %arg2: memref<384x128xbf16, #tpu.memory_space<vmem>>, %arg3: memref<3x128xf32, #tpu.memory_space<vmem>>, %arg4: memref<64x128xf32, #tpu.memory_space<vmem>>) attributes {dimension_semantics = [#tpu.dimension_semantics<parallel>], iteration_bounds = array<i64: 2>, scalar_prefetch = 0 : i64, scratch_operands = 0 : i64, tpu.core_type = #tpu.core_type<tc>, window_params = [{transform_indices = @transform_0, window_bounds = array<i64: 64, 128>}, {pipeline_mode = #tpu.pipeline_mode<synchronous>, transform_indices = @transform_1, window_bounds = array<i64: 384, 128>}, {pipeline_mode = #tpu.pipeline_mode<synchronous>, transform_indices = @transform_2, window_bounds = array<i64: 3, 128>}, {transform_indices = @transform_3, window_bounds = array<i64: 64, 128>}]} {
    %c0 = arith.constant 0 : index
    %c0_0 = arith.constant 0 : index
    %0 = vector.load %arg1[%c0, %c0_0] : memref<64x128xf32, #tpu.memory_space<vmem>>, vector<64x128xf32>
    %c0_1 = arith.constant 0 : index
    %c0_2 = arith.constant 0 : index
    %1 = vector.load %arg2[%c0_1, %c0_2] : memref<384x128xbf16, #tpu.memory_space<vmem>>, vector<128x128xbf16>
    %c0_3 = arith.constant 0 : index
    %c0_4 = arith.constant 0 : index
    %2 = vector.load %arg3[%c0_3, %c0_4] : memref<3x128xf32, #tpu.memory_space<vmem>>, vector<1x128xf32>
    %3 = arith.truncf %0 : vector<64x128xf32> to vector<64x128xbf16>
    %cst = arith.constant dense<0.000000e+00> : vector<64x128xf32>
    %4 = tpu.matmul %3, %1, %cst {dimension_numbers = #tpu.dot_dimension_numbers<[1], [0], [0], [1], [0, 0, 1, 1], [], []>} : vector<64x128xbf16>, vector<128x128xbf16>, vector<64x128xf32> -> vector<64x128xf32>
    %5 = vector.broadcast %2 : vector<1x128xf32> to vector<64x128xf32>
    %6 = arith.addf %4, %5 : vector<64x128xf32>
    %7 = math.tanh %6 : vector<64x128xf32>
    %c128 = arith.constant 128 : index
    %c0_5 = arith.constant 0 : index
    %8 = vector.load %arg2[%c128, %c0_5] : memref<384x128xbf16, #tpu.memory_space<vmem>>, vector<128x128xbf16>
    %c1 = arith.constant 1 : index
    %c0_6 = arith.constant 0 : index
    %9 = vector.load %arg3[%c1, %c0_6] : memref<3x128xf32, #tpu.memory_space<vmem>>, vector<1x128xf32>
    %10 = arith.truncf %7 : vector<64x128xf32> to vector<64x128xbf16>
    %cst_7 = arith.constant dense<0.000000e+00> : vector<64x128xf32>
    %11 = tpu.matmul %10, %8, %cst_7 {dimension_numbers = #tpu.dot_dimension_numbers<[1], [0], [0], [1], [0, 0, 1, 1], [], []>} : vector<64x128xbf16>, vector<128x128xbf16>, vector<64x128xf32> -> vector<64x128xf32>
    %12 = vector.broadcast %9 : vector<1x128xf32> to vector<64x128xf32>
    %13 = arith.addf %11, %12 : vector<64x128xf32>
    %14 = math.tanh %13 : vector<64x128xf32>
    %c256 = arith.constant 256 : index
    %c0_8 = arith.constant 0 : index
    %15 = vector.load %arg2[%c256, %c0_8] : memref<384x128xbf16, #tpu.memory_space<vmem>>, vector<128x128xbf16>
    %c2 = arith.constant 2 : index
    %c0_9 = arith.constant 0 : index
    %16 = vector.load %arg3[%c2, %c0_9] : memref<3x128xf32, #tpu.memory_space<vmem>>, vector<1x128xf32>
    %17 = arith.truncf %14 : vector<64x128xf32> to vector<64x128xbf16>
    %cst_10 = arith.constant dense<0.000000e+00> : vector<64x128xf32>
    %18 = tpu.matmul %17, %15, %cst_10 {dimension_numbers = #tpu.dot_dimension_numbers<[1], [0], [0], [1], [0, 0, 1, 1], [], []>} : vector<64x128xbf16>, vector<128x128xbf16>, vector<64x128xf32> -> vector<64x128xf32>
    %19 = vector.broadcast %16 : vector<1x128xf32> to vector<64x128xf32>
    %20 = arith.addf %18, %19 : vector<64x128xf32>
    %c0_11 = arith.constant 0 : index
    %c0_12 = arith.constant 0 : index
    %21 = vector.load %arg4[%c0_11, %c0_12] : memref<64x128xf32, #tpu.memory_space<vmem>>, vector<64x128xf32>
    tpu.vector_store %arg4[%c0_11, %c0_12], %20 {strides = array<i32>} : memref<64x128xf32, #tpu.memory_space<vmem>>, vector<64x128xf32>,
    return
  }
  func.func @transform_0(%arg0: i32) -> (i32, i32) {
    %c0_i32 = arith.constant 0 : i32
    %c0_i32_0 = arith.constant 0 : i32
    return %arg0, %c0_i32 : i32, i32
  }
  func.func @transform_1(%arg0: i32) -> (i32, i32) {
    %c0_i32 = arith.constant 0 : i32
    %c0_i32_0 = arith.constant 0 : i32
    %c0_i32_1 = arith.constant 0 : i32
    return %c0_i32, %c0_i32_0 : i32, i32
  }
  func.func @transform_2(%arg0: i32) -> (i32, i32) {
    %c0_i32 = arith.constant 0 : i32
    %c0_i32_0 = arith.constant 0 : i32
    %c0_i32_1 = arith.constant 0 : i32
    return %c0_i32, %c0_i32_0 : i32, i32
  }
  func.func @transform_3(%arg0: i32) -> (i32, i32) {
    %c0_i32 = arith.constant 0 : i32
    %c0_i32_0 = arith.constant 0 : i32
    return %arg0, %c0_i32 : i32, i32
  }
}

</mosaic_0001>

<llo_original>
// kernel: tpu_custom_call.1
$region0: #{tpu_custom_call.1}
  #allocation0 [shape = 'u32[]', space=smem, size = 0x4, offset = 0x4, fixed_abs, tag = 'smem constant byte address 0x4 - core index']
  #allocation1 [shape = 'u32[144,128]{1,0:T(1,128)}', space=vmem, size = 0x12000, scoped, tag = 'internal scratch']
  %s0 = inlined_call_operand.hbm [shape: f32[128,128], index: 0, kind: input, shape index: {}]
  %s1 = inlined_call_operand.hbm [shape: bf16[384,128], index: 1, kind: input, shape index: {}]
  %s2 = inlined_call_operand.vmem [shape: f32[3,128], index: 2, kind: input, shape index: {}]
  %s3 = inlined_call_operand.hbm [shape: f32[128,128], index: 3, kind: output, shape index: {}]
  %s4 = sld [smem:[#allocation0]]
  $region53: #{tpu_custom_call.1} parent=0
    _
  %s6 = ssub.s32 1, %s4
  %s7 = scalar_select 0, %s6, %s4
  $region1: #{tpu_custom_call.1} parent=0
    #allocation2 [shape = 'u8[65536]{0}', space=vmem, size = 0x10000, scoped, tag = 'input window, operand 0']
    #allocation3 [shape = 's32[2]{0}', space=sflag, size = 0x8, scoped, tag = 'scoped memory for tpu_custom_call.1']
    #allocation4 [shape = 's32[2]{0}', space=sflag, size = 0x8, scoped, tag = 'scoped memory for tpu_custom_call.1']
    #allocation5 [shape = 'u8[98304]{0}', space=vmem, size = 0x18000, scoped, tag = 'input window, operand 1, single buffered']
    #allocation6 [shape = 's32[1]{0}', space=sflag, size = 0x4, scoped, tag = 'scoped memory for tpu_custom_call.1']
    #allocation7 [shape = 'u8[65536]{0}', space=vmem, size = 0x10000, scoped, tag = 'output window, operand 0']
    %8 = vsyncpa [#allocation3], 0
    %s9 = scalar_lea.sflag [#allocation3], 1
    %10 = vsyncpa %s9, 0
    %11 = vsyncpa [#allocation6], 0
    %12 = vsyncpa [#allocation4], 0
    %s13 = scalar_lea.sflag [#allocation4], 1
    %14 = vsyncpa %s13, 0
    loop: start=0, step=1, limit=4
    $region2: #{tpu_custom_call.1} parent=1 // loop_pre_header
      _
    $region3: #{tpu_custom_call.1} parent=1 // loop_header
      %s16 = sphi 0, %s20
      %p17 = scmp.ge.s32.totalorder %s16, 4
      %s26 = sphi 0, %s28
      %s29 = sphi 0, %s26
      %s30 = sphi 0, %s29
      %s46 = sphi 0, %s30
      %s50 = sphi 0, %s50
      %s52 = sphi 0, %s50
      %s53 = sphi 0, %s52
      %s67 = sphi 0, %s53
      %s71 = sphi 0, %s71
      %s73 = sphi 0, %s71
      %s74 = sphi 0, %s73
      %s88 = sphi 0, %s74
      %s94 = sphi 0, %s96
      %s97 = sphi 0, %s94
      %s98 = sphi 0, %s97
      %s114 = sphi 0, %s98
    $region4: #{tpu_custom_call.1} parent=1 // loop_header_branch
      %19 = sbr.rel (%p17) target = $region8
    $region5: #{tpu_custom_call.1} parent=1 // loop_body
      %s21 = ssub.s32 %s16, 1
      %s22 = ssub.s32 %s16, 2
      %s23 = sadd.s32 %s16, 1
      %s24 = ssub.s32 %s16, %s23
      %p25 = scmp.eq.s32.totalorder %s24, 0
      %s27 = sadd.s32 %s26, 1
      %s28 = scalar_select %p25, %s26, %s27
      %p31 = pneg %p25
      %p32 = scmp.eq.s32.totalorder %s16, 1
      %p33 = por %p31, %p32
      %p34 = scmp.ne.s32.totalorder %s26, %s29
      %p35 = scmp.eq.s32.totalorder %s16, 0
      %p36 = por %p34, %p35
      %p37 = scmp.ne.s32.totalorder %s26, %s29
      %p38 = scmp.eq.s32.totalorder %s21, 1
      %p39 = por %p37, %p38
      %p40 = scmp.ne.s32.totalorder %s29, %s30
      %p41 = scmp.eq.s32.totalorder %s21, 0
      %p42 = por %p40, %p41
      %p43 = scmp.ne.s32.totalorder %s29, %s30
      %p44 = scmp.eq.s32.totalorder %s22, 1
      %p45 = por %p43, %p44
      %p47 = scmp.ne.s32.totalorder %s30, %s46
      %p48 = scmp.eq.s32.totalorder %s22, 0
      %p49 = por %p47, %p48
      %s51 = sadd.s32 %s50, 1
      %p54 = scmp.eq.s32.totalorder %s16, 1
      %p55 = scmp.ne.s32.totalorder %s50, %s52
      %p56 = scmp.eq.s32.totalorder %s16, 0
      %p57 = por %p55, %p56
      %p58 = scmp.ne.s32.totalorder %s50, %s52
      %p59 = scmp.eq.s32.totalorder %s21, 1
      %p60 = por %p58, %p59
      %p61 = scmp.ne.s32.totalorder %s52, %s53
      %p62 = scmp.eq.s32.totalorder %s21, 0
      %p63 = por %p61, %p62
      %p64 = scmp.ne.s32.totalorder %s52, %s53
      %p65 = scmp.eq.s32.totalorder %s22, 1
      %p66 = por %p64, %p65
      %p68 = scmp.ne.s32.totalorder %s53, %s67
      %p69 = scmp.eq.s32.totalorder %s22, 0
      %p70 = por %p68, %p69
      %s72 = sadd.s32 %s71, 1
      %p75 = scmp.eq.s32.totalorder %s16, 1
      %p76 = scmp.ne.s32.totalorder %s71, %s73
      %p77 = scmp.eq.s32.totalorder %s16, 0
      %p78 = por %p76, %p77
      %p79 = scmp.ne.s32.totalorder %s71, %s73
      %p80 = scmp.eq.s32.totalorder %s21, 1
      %p81 = por %p79, %p80
      %p82 = scmp.ne.s32.totalorder %s73, %s74
      %p83 = scmp.eq.s32.totalorder %s21, 0
      %p84 = por %p82, %p83
      %p85 = scmp.ne.s32.totalorder %s73, %s74
      %p86 = scmp.eq.s32.totalorder %s22, 1
      %p87 = por %p85, %p86
      %p89 = scmp.ne.s32.totalorder %s74, %s88
      %p90 = scmp.eq.s32.totalorder %s22, 0
      %p91 = por %p89, %p90
      %s92 = ssub.s32 %s16, %s23
      %p93 = scmp.eq.s32.totalorder %s92, 0
      %s95 = sadd.s32 %s94, 1
      %s96 = scalar_select %p93, %s94, %s95
      %p99 = pneg %p93
      %p100 = scmp.eq.s32.totalorder %s16, 1
      %p101 = por %p99, %p100
      %p102 = scmp.ne.s32.totalorder %s94, %s97
      %p103 = scmp.eq.s32.totalorder %s16, 0
      %p104 = por %p102, %p103
      %p105 = scmp.ne.s32.totalorder %s94, %s97
      %p106 = scmp.eq.s32.totalorder %s21, 1
      %p107 = por %p105, %p106
      %p108 = scmp.ne.s32.totalorder %s97, %s98
      %p109 = scmp.eq.s32.totalorder %s21, 0
      %p110 = por %p108, %p109
      %p111 = scmp.ne.s32.totalorder %s97, %s98
      %p112 = scmp.eq.s32.totalorder %s22, 1
      %p113 = por %p111, %p112
      %p115 = scmp.ne.s32.totalorder %s98, %s114
      %p116 = scmp.eq.s32.totalorder %s22, 0
      %p117 = por %p115, %p116
      %p118 = scmp.le.s32.totalorder 1, %s16
      %p119 = scmp.lt.s32.totalorder %s16, 3
      %p120 = pnand %p118, %p119
      %p121 = pneg %p120
      // Predicated region
      $region9: #{tpu_custom_call.1} parent=5 // pred_check
        _
      $region10: #{tpu_custom_call.1} parent=5 // pred_check_branch
        %123 = sbr.rel (%p120) target = $region12
      $region11: #{tpu_custom_call.1} parent=5 // pred_region
        %s124 = ssub.s32 %s16, 1
        // Predicated region
        $region13: #{tpu_custom_call.1} parent=11 // pred_check
          %p125 = pneg %p63
        $region14: #{tpu_custom_call.1} parent=11 // pred_check_branch
          %127 = sbr.rel (%p125) target = $region16
        $region15: #{tpu_custom_call.1} parent=11 // pred_region
          %s129 = ssub.s32 3072, 3072
          %130 = vsyncadd [#allocation6], %s129
          %s131 = sshll.u32 [#allocation5], 4
          %s132 = int_to_ptr.vmem [resolvable:$true] %s131
          %137 = dma.hbm_to_vmem [thread:$0]  %s1, 3072, %s132, [#allocation6], 64, 64, 4
        $region16: #{tpu_custom_call.1} parent=11 // pred_fallthru
          _
        // Predicated region
        $region17: #{tpu_custom_call.1} parent=11 // pred_check
          %p138 = pneg %p84
        $region18: #{tpu_custom_call.1} parent=11 // pred_check_branch
          %140 = sbr.rel (%p138) target = $region20
        $region19: #{tpu_custom_call.1} parent=11 // pred_region
          _
        $region20: #{tpu_custom_call.1} parent=11 // pred_fallthru
          _
      $region12: #{tpu_custom_call.1} parent=5 // pred_fallthru
        _
      %p141 = scmp.lt.s32.totalorder %s16, 2
      // Predicated region
      $region21: #{tpu_custom_call.1} parent=5 // pred_check
        %p142 = pneg %p141
      $region22: #{tpu_custom_call.1} parent=5 // pred_check_branch
        %144 = sbr.rel (%p142) target = $region24
      $region23: #{tpu_custom_call.1} parent=5 // pred_region
        // Predicated region
        $region25: #{tpu_custom_call.1} parent=23 // pred_check
          %p145 = pneg %p36
        $region26: #{tpu_custom_call.1} parent=23 // pred_check_branch
          %147 = sbr.rel (%p145) target = $region28
        $region27: #{tpu_custom_call.1} parent=23 // pred_region
          %s148 = sand.u32 %s26, 1
          %s149 = scalar_lea.sflag [#allocation3], %s148
          %s150 = sand.u32 %s26, 1
          %s151 = smul.addr %s150, 64
          %s152 = scalar_lea.vmem [#allocation2], %s151
          %s153 = smul.u32 8, %s16
          %s155 = ssub.s32 1024, 1024
          %156 = vsyncadd %s149, %s155
          %s157 = smul.addr %s153, 128
          %s158 = scalar_lea.hbm %s0, %s157
          %s159 = sshll.u32 %s152, 4
          %s160 = int_to_ptr.vmem [resolvable:$true] %s159
          %165 = dma.hbm_to_vmem [thread:$0]  %s158, 1024, %s160, %s149, 128, 128, 8
        $region28: #{tpu_custom_call.1} parent=23 // pred_fallthru
          _
      $region24: #{tpu_custom_call.1} parent=5 // pred_fallthru
        _
      %p166 = scmp.le.s32.totalorder 1, %s16
      %p167 = scmp.lt.s32.totalorder %s16, 3
      %p168 = pnand %p166, %p167
      %p169 = pneg %p168
      // Predicated region
      $region29: #{tpu_custom_call.1} parent=5 // pred_check
        _
      $region30: #{tpu_custom_call.1} parent=5 // pred_check_branch
        %171 = sbr.rel (%p168) target = $region32
      $region31: #{tpu_custom_call.1} parent=5 // pred_region
        %s172 = ssub.s32 %s16, 1
        %s173 = sand.u32 %s29, 1
        %s174 = scalar_lea.sflag [#allocation3], %s173
        %s175 = sand.u32 %s29, 1
        %s176 = smul.addr %s175, 64
        %s177 = scalar_lea.vmem [#allocation2], %s176
        // Predicated region
        $region33: #{tpu_custom_call.1} parent=31 // pred_check
          %p178 = pneg %p42
        $region34: #{tpu_custom_call.1} parent=31 // pred_check_branch
          %180 = sbr.rel (%p178) target = $region36
        $region35: #{tpu_custom_call.1} parent=31 // pred_region
          %181 = dma.done %s174, 1024
        $region36: #{tpu_custom_call.1} parent=31 // pred_fallthru
          _
        // Predicated region
        $region37: #{tpu_custom_call.1} parent=31 // pred_check
          %p182 = pneg %p63
        $region38: #{tpu_custom_call.1} parent=31 // pred_check_branch
          %184 = sbr.rel (%p182) target = $region40
        $region39: #{tpu_custom_call.1} parent=31 // pred_region
          %185 = dma.done [#allocation6], 3072
        $region40: #{tpu_custom_call.1} parent=31 // pred_fallthru
          _
        %s186 = sand.u32 %s29, 1
        %s187 = scalar_lea.sflag [#allocation3], %s186
        %s188 = sand.u32 %s29, 1
        %s189 = smul.addr %s188, 64
        %s190 = scalar_lea.vmem [#allocation2], %s189
        %p191 = pneg %p42
        %p192 = pneg %p39
        %p193 = pneg %p63
        %p194 = pneg %p60
        %p195 = pneg %p84
        %p196 = pneg %p81
        %p197 = pneg %p110
        %p198 = pneg %p107
        %s199 = sand.u32 %s97, 1
        %s200 = scalar_lea.sflag [#allocation4], %s199
        %s201 = sand.u32 %s97, 1
        %s202 = smul.addr %s201, 64
        %s203 = scalar_lea.vmem [#allocation7], %s202
        %s204 = smul.u32 8, %s21
        %s205 = smul.u32 8, %s21
        %v207 = vld [vmem:[%s177] sm:$0xff]
        %v208 = vld [vmem:[%s177 + $0x8] sm:$0xff]
        %v209 = vld [vmem:[%s177 + $0x10] sm:$0xff]
        %v210 = vld [vmem:[%s177 + $0x18] sm:$0xff]
        %v211 = vld [vmem:[%s177 + $0x20] sm:$0xff]
        %v212 = vld [vmem:[%s177 + $0x28] sm:$0xff]
        %v213 = vld [vmem:[%s177 + $0x30] sm:$0xff]
        %v214 = vld [vmem:[%s177 + $0x38] sm:$0xff]
        %v215 = vld [vmem:[#allocation5] sm:$0xf]
        %v216 = vld [vmem:[#allocation5 + $0x4] sm:$0xf]
        %v217 = vld [vmem:[#allocation5 + $0x8] sm:$0xf]
        %v218 = vld [vmem:[#allocation5 + $0xc] sm:$0xf]
        %v219 = vld [vmem:[#allocation5 + $0x10] sm:$0xf]
        %v220 = vld [vmem:[#allocation5 + $0x14] sm:$0xf]
        %v221 = vld [vmem:[#allocation5 + $0x18] sm:$0xf]
        %v222 = vld [vmem:[#allocation5 + $0x1c] sm:$0xf]
        %v223 = vld [vmem:[#allocation5 + $0x20] sm:$0xf]
        %v224 = vld [vmem:[#allocation5 + $0x24] sm:$0xf]
        %v225 = vld [vmem:[#allocation5 + $0x28] sm:$0xf]
        %v226 = vld [vmem:[#allocation5 + $0x2c] sm:$0xf]
        %v227 = vld [vmem:[#allocation5 + $0x30] sm:$0xf]
        %v228 = vld [vmem:[#allocation5 + $0x34] sm:$0xf]
        %v229 = vld [vmem:[#allocation5 + $0x38] sm:$0xf]
        %v230 = vld [vmem:[#allocation5 + $0x3c] sm:$0xf]
        %v231 = vld [vmem:[%s2] sm:$0x1]
        %v232 = vpack.c.bf16 %v208, %v207
        %v233 = vpack.c.bf16 %v210, %v209
        %v234 = vpack.c.bf16 %v212, %v211
        %v235 = vpack.c.bf16 %v214, %v213
        %v236 = vlaneseq
        %v237 = vshrl.u32 %v236, 7
        %v238 = vsub.s32 0, %v237
        %v239 = vrot.slane %v231, %v238
        %v256 = vunpack.c.l.b16 %v215
        %v257 = vunpack.c.l.b16 %v216
        %v258 = vunpack.c.l.b16 %v217
        %v259 = vunpack.c.l.b16 %v218
        %v260 = vunpack.c.l.b16 %v219
        %v261 = vunpack.c.l.b16 %v220
        %v262 = vunpack.c.l.b16 %v221
        %v263 = vunpack.c.l.b16 %v222
        %v264 = vunpack.c.l.b16 %v223
        %v265 = vunpack.c.l.b16 %v224
        %v266 = vunpack.c.l.b16 %v225
        %v267 = vunpack.c.l.b16 %v226
        %v268 = vunpack.c.l.b16 %v227
        %v269 = vunpack.c.l.b16 %v228
        %v270 = vunpack.c.l.b16 %v229
        %v271 = vunpack.c.l.b16 %v230
        %v272 = vpack.c.b16 %v257, %v256
        %v273 = vpack.c.b16 %v259, %v258
        %v274 = vpack.c.b16 %v261, %v260
        %v275 = vpack.c.b16 %v263, %v262
        %v276 = vpack.c.b16 %v265, %v264
        %v277 = vpack.c.b16 %v267, %v266
        %v278 = vpack.c.b16 %v269, %v268
        %v279 = vpack.c.b16 %v271, %v270
        %288 = vmatprep.subr.bf16.mxu0 0
        %289 = vmatpush1.bf16.msra.mxu0 %v272
        %290 = vmatprep.subr.bf16.mxu0 0
        %291 = vmatpush1.bf16.msra.mxu0 %v273
        %292 = vmatprep.subr.bf16.mxu0 0
        %293 = vmatpush1.bf16.msra.mxu0 %v274
        %294 = vmatprep.subr.bf16.mxu0 0
        %295 = vmatpush1.bf16.msra.mxu0 %v275
        %296 = vmatprep.subr.bf16.mxu0 0
        %297 = vmatpush1.bf16.msra.mxu0 %v276
        %298 = vmatprep.subr.bf16.mxu0 0
        %299 = vmatpush1.bf16.msra.mxu0 %v277
        %300 = vmatprep.subr.bf16.mxu0 0
        %301 = vmatpush1.bf16.msra.mxu0 %v278
        %302 = vmatprep.subr.bf16.mxu0 0
        %303 = vmatpush1.bf16.msra.mxu0 %v279
        %304 = vmatprep.subr.bf16.mxu0 0
        %305 = vmatpush1.bf16.msra.mxu0 0
        %306 = vmatprep.subr.bf16.mxu0 0
        %307 = vmatpush1.bf16.msra.mxu0 0
        %308 = vmatprep.subr.bf16.mxu0 0
        %309 = vmatpush1.bf16.msra.mxu0 0
        %310 = vmatprep.subr.bf16.mxu0 0
        %311 = vmatpush1.bf16.msra.mxu0 0
        %312 = vmatprep.subr.bf16.mxu0 0
        %313 = vmatpush1.bf16.msra.mxu0 0
        %314 = vmatprep.subr.bf16.mxu0 0
        %315 = vmatpush1.bf16.msra.mxu0 0
        %316 = vmatprep.subr.bf16.mxu0 0
        %317 = vmatpush1.bf16.msra.mxu0 0
        %318 = vmatprep.subr.bf16.mxu0 0
        %319 = vmatpush1.bf16.msra.mxu0 0
        %320 = vmatprep.mubr.bf16.mxu0 0
        %321 = vmatmul.mubr.bf16.gmra.mrb[0].mxu0 %v232
        %v322 = vpop.f32.mrb[0].mxu0
        %v323 = vadd.f32 %v239, %v322
        %v324 = vpop.f32.mrb[0].mxu0
        %v325 = vpop.f32.mrb[0].mxu0
        %v326 = vadd.f32 %v239, %v325
        %v327 = vpop.f32.mrb[0].mxu0
        %328 = vmatprep.mubr.bf16.mxu0 0
        %329 = vmatmul.mubr.bf16.gmra.mrb[0].mxu0 %v233
        %v330 = vpop.f32.mrb[0].mxu0
        %v331 = vadd.f32 %v239, %v330
        %v332 = vpop.f32.mrb[0].mxu0
        %v333 = vpop.f32.mrb[0].mxu0
        %v334 = vadd.f32 %v239, %v333
        %v335 = vpop.f32.mrb[0].mxu0
        %336 = vmatprep.mubr.bf16.mxu0 0
        %337 = vmatmul.mubr.bf16.gmra.mrb[0].mxu0 %v234
        %v338 = vpop.f32.mrb[0].mxu0
        %v339 = vadd.f32 %v239, %v338
        %v340 = vpop.f32.mrb[0].mxu0
        %v341 = vpop.f32.mrb[0].mxu0
        %v342 = vadd.f32 %v239, %v341
        %v343 = vpop.f32.mrb[0].mxu0
        %344 = vmatprep.mubr.bf16.mxu0 0
        %345 = vmatmul.mubr.bf16.gmra.mrb[0].mxu0 %v235
        %v346 = vpop.f32.mrb[0].mxu0
        %v347 = vadd.f32 %v239, %v346
        %v348 = vpop.f32.mrb[0].mxu0
        %v349 = vpop.f32.mrb[0].mxu0
        %v350 = vadd.f32 %v239, %v349
        %v351 = vpop.f32.mrb[0].mxu0
        %352 = vdwg.mxu0
        %v353 = vtanh.pop %v323
        %v354 = vtanh.pop %v326
        %v355 = vtanh.pop %v331
        %v356 = vtanh.pop %v334
        %v357 = vtanh.pop %v339
        %v358 = vtanh.pop %v342
        %v359 = vtanh.pop %v347
        %v360 = vtanh.pop %v350
        %v361 = vld [vmem:[#allocation5 + $0x40] sm:$0xf]
        %v362 = vld [vmem:[#allocation5 + $0x44] sm:$0xf]
        %v363 = vld [vmem:[#allocation5 + $0x48] sm:$0xf]
        %v364 = vld [vmem:[#allocation5 + $0x4c] sm:$0xf]
        %v365 = vld [vmem:[#allocation5 + $0x50] sm:$0xf]
        %v366 = vld [vmem:[#allocation5 + $0x54] sm:$0xf]
        %v367 = vld [vmem:[#allocation5 + $0x58] sm:$0xf]
        %v368 = vld [vmem:[#allocation5 + $0x5c] sm:$0xf]
        %v369 = vld [vmem:[#allocation5 + $0x60] sm:$0xf]
        %v370 = vld [vmem:[#allocation5 + $0x64] sm:$0xf]
        %v371 = vld [vmem:[#allocation5 + $0x68] sm:$0xf]
        %v372 = vld [vmem:[#allocation5 + $0x6c] sm:$0xf]
        %v373 = vld [vmem:[#allocation5 + $0x70] sm:$0xf]
        %v374 = vld [vmem:[#allocation5 + $0x74] sm:$0xf]
        %v375 = vld [vmem:[#allocation5 + $0x78] sm:$0xf]
        %v376 = vld [vmem:[#allocation5 + $0x7c] sm:$0xf]
        %v377 = vld [vmem:[%s2 + $0x1] sm:$0x1]
        %v378 = vpack.c.bf16 %v354, %v353
        %v379 = vpack.c.bf16 %v356, %v355
        %v380 = vpack.c.bf16 %v358, %v357
        %v381 = vpack.c.bf16 %v360, %v359
        %v382 = vlaneseq
        %v383 = vshrl.u32 %v382, 7
        %v384 = vsub.s32 0, %v383
        %v385 = vrot.slane %v377, %v384
        %v402 = vunpack.c.l.b16 %v361
        %v403 = vunpack.c.l.b16 %v362
        %v404 = vunpack.c.l.b16 %v363
        %v405 = vunpack.c.l.b16 %v364
        %v406 = vunpack.c.l.b16 %v365
        %v407 = vunpack.c.l.b16 %v366
        %v408 = vunpack.c.l.b16 %v367
        %v409 = vunpack.c.l.b16 %v368
        %v410 = vunpack.c.l.b16 %v369
        %v411 = vunpack.c.l.b16 %v370
        %v412 = vunpack.c.l.b16 %v371
        %v413 = vunpack.c.l.b16 %v372
        %v414 = vunpack.c.l.b16 %v373
        %v415 = vunpack.c.l.b16 %v374
        %v416 = vunpack.c.l.b16 %v375
        %v417 = vunpack.c.l.b16 %v376
        %v418 = vpack.c.b16 %v403, %v402
        %v419 = vpack.c.b16 %v405, %v404
        %v420 = vpack.c.b16 %v407, %v406
        %v421 = vpack.c.b16 %v409, %v408
        %v422 = vpack.c.b16 %v411, %v410
        %v423 = vpack.c.b16 %v413, %v412
        %v424 = vpack.c.b16 %v415, %v414
        %v425 = vpack.c.b16 %v417, %v416
        %434 = vmatprep.subr.bf16.mxu0 0
        %435 = vmatpush1.bf16.msra.mxu0 %v418
        %436 = vmatprep.subr.bf16.mxu0 0
        %437 = vmatpush1.bf16.msra.mxu0 %v419
        %438 = vmatprep.subr.bf16.mxu0 0
        %439 = vmatpush1.bf16.msra.mxu0 %v420
        %440 = vmatprep.subr.bf16.mxu0 0
        %441 = vmatpush1.bf16.msra.mxu0 %v421
        %442 = vmatprep.subr.bf16.mxu0 0
        %443 = vmatpush1.bf16.msra.mxu0 %v422
        %444 = vmatprep.subr.bf16.mxu0 0
        %445 = vmatpush1.bf16.msra.mxu0 %v423
        %446 = vmatprep.subr.bf16.mxu0 0
        %447 = vmatpush1.bf16.msra.mxu0 %v424
        %448 = vmatprep.subr.bf16.mxu0 0
        %449 = vmatpush1.bf16.msra.mxu0 %v425
        %450 = vmatprep.subr.bf16.mxu0 0
        %451 = vmatpush1.bf16.msra.mxu0 0
        %452 = vmatprep.subr.bf16.mxu0 0
        %453 = vmatpush1.bf16.msra.mxu0 0
        %454 = vmatprep.subr.bf16.mxu0 0
        %455 = vmatpush1.bf16.msra.mxu0 0
        %456 = vmatprep.subr.bf16.mxu0 0
        %457 = vmatpush1.bf16.msra.mxu0 0
        %458 = vmatprep.subr.bf16.mxu0 0
        %459 = vmatpush1.bf16.msra.mxu0 0
        %460 = vmatprep.subr.bf16.mxu0 0
        %461 = vmatpush1.bf16.msra.mxu0 0
        %462 = vmatprep.subr.bf16.mxu0 0
        %463 = vmatpush1.bf16.msra.mxu0 0
        %464 = vmatprep.subr.bf16.mxu0 0
        %465 = vmatpush1.bf16.msra.mxu0 0
        %466 = vmatprep.mubr.bf16.mxu0 0
        %467 = vmatmul.mubr.bf16.gmra.mrb[0].mxu0 %v378
        %v468 = vpop.f32.mrb[0].mxu0
        %v469 = vadd.f32 %v385, %v468
        %v470 = vpop.f32.mrb[0].mxu0
        %v471 = vpop.f32.mrb[0].mxu0
        %v472 = vadd.f32 %v385, %v471
        %v473 = vpop.f32.mrb[0].mxu0
        %474 = vmatprep.mubr.bf16.mxu0 0
        %475 = vmatmul.mubr.bf16.gmra.mrb[0].mxu0 %v379
        %v476 = vpop.f32.mrb[0].mxu0
        %v477 = vadd.f32 %v385, %v476
        %v478 = vpop.f32.mrb[0].mxu0
        %v479 = vpop.f32.mrb[0].mxu0
        %v480 = vadd.f32 %v385, %v479
        %v481 = vpop.f32.mrb[0].mxu0
        %482 = vmatprep.mubr.bf16.mxu0 0
        %483 = vmatmul.mubr.bf16.gmra.mrb[0].mxu0 %v380
        %v484 = vpop.f32.mrb[0].mxu0
        %v485 = vadd.f32 %v385, %v484
        %v486 = vpop.f32.mrb[0].mxu0
        %v487 = vpop.f32.mrb[0].mxu0
        %v488 = vadd.f32 %v385, %v487
        %v489 = vpop.f32.mrb[0].mxu0
        %490 = vmatprep.mubr.bf16.mxu0 0
        %491 = vmatmul.mubr.bf16.gmra.mrb[0].mxu0 %v381
        %v492 = vpop.f32.mrb[0].mxu0
        %v493 = vadd.f32 %v385, %v492
        %v494 = vpop.f32.mrb[0].mxu0
        %v495 = vpop.f32.mrb[0].mxu0
        %v496 = vadd.f32 %v385, %v495
        %v497 = vpop.f32.mrb[0].mxu0
        %498 = vdwg.mxu0
        %v499 = vtanh.pop %v469
        %v500 = vtanh.pop %v472
        %v501 = vtanh.pop %v477
        %v502 = vtanh.pop %v480
        %v503 = vtanh.pop %v485
        %v504 = vtanh.pop %v488
        %v505 = vtanh.pop %v493
        %v506 = vtanh.pop %v496
        %v507 = vld [vmem:[#allocation5 + $0x80] sm:$0xf]
        %v508 = vld [vmem:[#allocation5 + $0x84] sm:$0xf]
        %v509 = vld [vmem:[#allocation5 + $0x88] sm:$0xf]
        %v510 = vld [vmem:[#allocation5 + $0x8c] sm:$0xf]
        %v511 = vld [vmem:[#allocation5 + $0x90] sm:$0xf]
        %v512 = vld [vmem:[#allocation5 + $0x94] sm:$0xf]
        %v513 = vld [vmem:[#allocation5 + $0x98] sm:$0xf]
        %v514 = vld [vmem:[#allocation5 + $0x9c] sm:$0xf]
        %v515 = vld [vmem:[#allocation5 + $0xa0] sm:$0xf]
        %v516 = vld [vmem:[#allocation5 + $0xa4] sm:$0xf]
        %v517 = vld [vmem:[#allocation5 + $0xa8] sm:$0xf]
        %v518 = vld [vmem:[#allocation5 + $0xac] sm:$0xf]
        %v519 = vld [vmem:[#allocation5 + $0xb0] sm:$0xf]
        %v520 = vld [vmem:[#allocation5 + $0xb4] sm:$0xf]
        %v521 = vld [vmem:[#allocation5 + $0xb8] sm:$0xf]
        %v522 = vld [vmem:[#allocation5 + $0xbc] sm:$0xf]
        %v523 = vld [vmem:[%s2 + $0x2] sm:$0x1]
        %v524 = vpack.c.bf16 %v500, %v499
        %v525 = vpack.c.bf16 %v502, %v501
        %v526 = vpack.c.bf16 %v504, %v503
        %v527 = vpack.c.bf16 %v506, %v505
        %v528 = vlaneseq
        %v529 = vshrl.u32 %v528, 7
        %v530 = vsub.s32 0, %v529
        %v531 = vrot.slane %v523, %v530
        %v548 = vunpack.c.l.b16 %v507
        %v549 = vunpack.c.l.b16 %v508
        %v550 = vunpack.c.l.b16 %v509
        %v551 = vunpack.c.l.b16 %v510
        %v552 = vunpack.c.l.b16 %v511
        %v553 = vunpack.c.l.b16 %v512
        %v554 = vunpack.c.l.b16 %v513
        %v555 = vunpack.c.l.b16 %v514
        %v556 = vunpack.c.l.b16 %v515
        %v557 = vunpack.c.l.b16 %v516
        %v558 = vunpack.c.l.b16 %v517
        %v559 = vunpack.c.l.b16 %v518
        %v560 = vunpack.c.l.b16 %v519
        %v561 = vunpack.c.l.b16 %v520
        %v562 = vunpack.c.l.b16 %v521
        %v563 = vunpack.c.l.b16 %v522
        %v564 = vpack.c.b16 %v549, %v548
        %v565 = vpack.c.b16 %v551, %v550
        %v566 = vpack.c.b16 %v553, %v552
        %v567 = vpack.c.b16 %v555, %v554
        %v568 = vpack.c.b16 %v557, %v556
        %v569 = vpack.c.b16 %v559, %v558
        %v570 = vpack.c.b16 %v561, %v560
        %v571 = vpack.c.b16 %v563, %v562
        %580 = vmatprep.subr.bf16.mxu0 0
        %581 = vmatpush1.bf16.msra.mxu0 %v564
        %582 = vmatprep.subr.bf16.mxu0 0
        %583 = vmatpush1.bf16.msra.mxu0 %v565
        %584 = vmatprep.subr.bf16.mxu0 0
        %585 = vmatpush1.bf16.msra.mxu0 %v566
        %586 = vmatprep.subr.bf16.mxu0 0
        %587 = vmatpush1.bf16.msra.mxu0 %v567
        %588 = vmatprep.subr.bf16.mxu0 0
        %589 = vmatpush1.bf16.msra.mxu0 %v568
        %590 = vmatprep.subr.bf16.mxu0 0
        %591 = vmatpush1.bf16.msra.mxu0 %v569
        %592 = vmatprep.subr.bf16.mxu0 0
        %593 = vmatpush1.bf16.msra.mxu0 %v570
        %594 = vmatprep.subr.bf16.mxu0 0
        %595 = vmatpush1.bf16.msra.mxu0 %v571
        %596 = vmatprep.subr.bf16.mxu0 0
        %597 = vmatpush1.bf16.msra.mxu0 0
        %598 = vmatprep.subr.bf16.mxu0 0
        %599 = vmatpush1.bf16.msra.mxu0 0
        %600 = vmatprep.subr.bf16.mxu0 0
        %601 = vmatpush1.bf16.msra.mxu0 0
        %602 = vmatprep.subr.bf16.mxu0 0
        %603 = vmatpush1.bf16.msra.mxu0 0
        %604 = vmatprep.subr.bf16.mxu0 0
        %605 = vmatpush1.bf16.msra.mxu0 0
        %606 = vmatprep.subr.bf16.mxu0 0
        %607 = vmatpush1.bf16.msra.mxu0 0
        %608 = vmatprep.subr.bf16.mxu0 0
        %609 = vmatpush1.bf16.msra.mxu0 0
        %610 = vmatprep.subr.bf16.mxu0 0
        %611 = vmatpush1.bf16.msra.mxu0 0
        %612 = vmatprep.mubr.bf16.mxu0 0
        %613 = vmatmul.mubr.bf16.gmra.mrb[0].mxu0 %v524
        %v614 = vpop.f32.mrb[0].mxu0
        %v615 = vadd.f32 %v531, %v614
        %v616 = vpop.f32.mrb[0].mxu0
        %v617 = vpop.f32.mrb[0].mxu0
        %v618 = vadd.f32 %v531, %v617
        %v619 = vpop.f32.mrb[0].mxu0
        %620 = vmatprep.mubr.bf16.mxu0 0
        %621 = vmatmul.mubr.bf16.gmra.mrb[0].mxu0 %v525
        %v622 = vpop.f32.mrb[0].mxu0
        %v623 = vadd.f32 %v531, %v622
        %v624 = vpop.f32.mrb[0].mxu0
        %v625 = vpop.f32.mrb[0].mxu0
        %v626 = vadd.f32 %v531, %v625
        %v627 = vpop.f32.mrb[0].mxu0
        %628 = vmatprep.mubr.bf16.mxu0 0
        %629 = vmatmul.mubr.bf16.gmra.mrb[0].mxu0 %v526
        %v630 = vpop.f32.mrb[0].mxu0
        %v631 = vadd.f32 %v531, %v630
        %v632 = vpop.f32.mrb[0].mxu0
        %v633 = vpop.f32.mrb[0].mxu0
        %v634 = vadd.f32 %v531, %v633
        %v635 = vpop.f32.mrb[0].mxu0
        %636 = vmatprep.mubr.bf16.mxu0 0
        %637 = vmatmul.mubr.bf16.gmra.mrb[0].mxu0 %v527
        %v638 = vpop.f32.mrb[0].mxu0
        %v639 = vadd.f32 %v531, %v638
        %v640 = vpop.f32.mrb[0].mxu0
        %v641 = vpop.f32.mrb[0].mxu0
        %v642 = vadd.f32 %v531, %v641
        %v643 = vpop.f32.mrb[0].mxu0
        %644 = vdwg.mxu0
        %645 = vst [vmem:[%s203] sm:$0xff] %v615
        %646 = vst [vmem:[%s203 + $0x8] sm:$0xff] %v618
        %647 = vst [vmem:[%s203 + $0x10] sm:$0xff] %v623
        %648 = vst [vmem:[%s203 + $0x18] sm:$0xff] %v626
        %649 = vst [vmem:[%s203 + $0x20] sm:$0xff] %v631
        %650 = vst [vmem:[%s203 + $0x28] sm:$0xff] %v634
        %651 = vst [vmem:[%s203 + $0x30] sm:$0xff] %v639
        %652 = vst [vmem:[%s203 + $0x38] sm:$0xff] %v642
        %s653 = sand.u32 %s97, 1
        %s654 = scalar_lea.sflag [#allocation4], %s653
        %s655 = sand.u32 %s97, 1
        %s656 = smul.addr %s655, 64
        %s657 = scalar_lea.vmem [#allocation7], %s656
        // Predicated region
        $region41: #{tpu_custom_call.1} parent=31 // pred_check
          %p658 = pneg %p107
        $region42: #{tpu_custom_call.1} parent=31 // pred_check_branch
          %660 = sbr.rel (%p658) target = $region44
        $region43: #{tpu_custom_call.1} parent=31 // pred_region
          %s661 = smul.u32 8, %s21
          %s663 = ssub.s32 1024, 1024
          %664 = vsyncadd %s654, %s663
          %s665 = smul.addr %s661, 128
          %s666 = scalar_lea.hbm %s3, %s665
          %s667 = sshll.u32 %s657, 4
          %s668 = int_to_ptr.vmem [resolvable:$true] %s667
          %673 = dma.vmem_to_hbm [thread:$0]  %s668, 1024, %s666, %s654, 128, 128, 8
        $region44: #{tpu_custom_call.1} parent=31 // pred_fallthru
          _
      $region32: #{tpu_custom_call.1} parent=5 // pred_fallthru
        _
      %p674 = scmp.le.s32.totalorder 2, %s16
      // Predicated region
      $region45: #{tpu_custom_call.1} parent=5 // pred_check
        %p675 = pneg %p674
      $region46: #{tpu_custom_call.1} parent=5 // pred_check_branch
        %677 = sbr.rel (%p675) target = $region48
      $region47: #{tpu_custom_call.1} parent=5 // pred_region
        %s678 = ssub.s32 %s16, 2
        // Predicated region
        $region49: #{tpu_custom_call.1} parent=47 // pred_check
          %p679 = pneg %p113
        $region50: #{tpu_custom_call.1} parent=47 // pred_check_branch
          %681 = sbr.rel (%p679) target = $region52
        $region51: #{tpu_custom_call.1} parent=47 // pred_region
          %s682 = sand.u32 %s98, 1
          %s683 = scalar_lea.sflag [#allocation4], %s682
          %s684 = sand.u32 %s98, 1
          %s685 = smul.addr %s684, 64
          %s686 = scalar_lea.vmem [#allocation7], %s685
          %687 = dma.done %s683, 1024
        $region52: #{tpu_custom_call.1} parent=47 // pred_fallthru
          _
      $region48: #{tpu_custom_call.1} parent=5 // pred_fallthru
        _
    $region6: #{tpu_custom_call.1} parent=1 // loop_footer
      %s20 = sadd.s32 1, %s16
    $region7: #{tpu_custom_call.1} parent=1 // loop_footer_branch
      %15 = sbr.rel target = $region3
    $region8: #{tpu_custom_call.1} parent=1 // loop_exit
      _
    %688 = vsyncpa [#allocation3], 1
    %s689 = scalar_lea.sflag [#allocation3], 1
    %690 = vsyncpa %s689, 1
    %691 = vsyncpa [#allocation6], 1
    %692 = vsyncpa [#allocation4], 1
    %s693 = scalar_lea.sflag [#allocation4], 1
    %694 = vsyncpa %s693, 1

</llo_original>
